<compile_context>
chip_gen: v6e
topology: v6e:2x2x1
jax: 0.10.0
libtpu: 0.0.40
codegen_flags: <defaults>
</compile_context>

<pallas_src>
from functools import partial

import jax
import jax.numpy as jnp
from jax import lax
from jax.experimental import pallas as pl
from jax.experimental.pallas import tpu as pltpu


# ----------------------------- helpers ---------------------------------------

def _vmem_capacity_bytes():
    try:
        return int(pltpu.get_tpu_info().vmem_capacity_bytes)
    except Exception:
        return 64 << 20          # conservative default (v7x per-core VMEM)


def _pick_hidden_chunk(hp):
    """Hidden-dim chunk that caps the live f32 intermediate at ~chunk*TS."""
    if hp <= 512:
        return hp
    for ch in (512, 256, 128):   # hp is always a multiple of 128
        if hp % ch == 0:
            return ch
    return 128


def _pick_seq_tile(S, B, fits):
    """Largest lane-dense (256-multiple) sequence tile whose VMEM estimate fits."""
    if S <= 256:
        return S                 # block == full dim (allowed)
    cands = [c for c in (2048, 1024, 512, 256) if c <= S and fits(c)]
    if not cands:
        cands = [256]
    if B == 1:                   # v7x megacore: keep >=2 iterations on the S axis
        for c in cands:
            if pl.cdiv(S, c) >= 2:
                return c
    return cands[0]


# ------------------------------ kernel ---------------------------------------

def _ffn_kernel(x_ref, w1_ref, b1_ref, w2_ref, b2_ref, o_ref):
    # x_ref : (d_embed, TS)      w1_ref: (Hp, d_embed)     b1_ref: (Hp, 1)  f32
    # w2_ref: (d_output, Hp)     b2_ref: (d_output, 1) f32 o_ref : (d_output, TS)
    hp = w1_ref.shape[0]
    d_out, ts = o_ref.shape
    ch = _pick_hidden_chunk(hp)

    x = x_ref[...].astype(w1_ref.dtype)                       # hoisted, matmul dtype
    acc = jnp.broadcast_to(b2_ref[...], (d_out, ts))          # f32 acc, b2 folded in

    for c in range(hp // ch):                                 # static chunk loop
        lo, hi = c * ch, (c + 1) * ch
        # h_c = relu(W1t[lo:hi] @ x + b1[lo:hi])  -- canonical (M,K)x(K,N)
        h = lax.dot_general(w1_ref[lo:hi, :], x, (((1,), (0,)), ((), ())),
                            preferred_element_type=jnp.float32)
        h = jnp.maximum(h + b1_ref[lo:hi, :], 0.0)
        # TODO(synk): dropout (p=0.1) is identity in eval mode; training-mode dropout
        # would use pltpu.prng_seed + pltpu.stateful_bernoulli on h here.
        h = h.astype(w2_ref.dtype)
        # acc += W2t[:, lo:hi] @ h_c  -- canonical (M,K)x(K,N)
        acc = acc + lax.dot_general(w2_ref[:, lo:hi], h, (((1,), (0,)), ((), ())),
                                    preferred_element_type=jnp.float32)

    o_ref[...] = acc.astype(o_ref.dtype)


# --------------------------- forward wrapper ----------------------------------

@partial(jax.jit, static_argnames=("use_pipeline_mode",))
def _forward(x, w1t, b1c, w2t, b2c, *, use_pipeline_mode):
    B, d_embed, S = x.shape
    hp = w1t.shape[0]
    d_output = w2t.shape[0]
    ch = _pick_hidden_chunk(hp)

    x_itemsize = x.dtype.itemsize
    w_itemsize = w1t.dtype.itemsize
    vmem_cap = _vmem_capacity_bytes()

    # Deeper input buffering when HBM-streaming-bound (small contraction dims).
    x_bufs = 3 if max(d_embed, d_output) <= 256 else 2
    w_bufs = 1 if use_pipeline_mode else 2

    def est(ts):
        weights = w_bufs * (hp * d_embed + d_output * hp) * w_itemsize
        biases = w_bufs * (hp + d_output) * 128 * 4            # lane-padded f32 columns
        tiles = (x_bufs * d_embed + 2 * d_output) * ts * x_itemsize
        interm = ch * ts * (4 + w_itemsize) + d_output * ts * 4  # h_c (f32+cast) + f32 acc
        return weights + biases + tiles + interm

    ts = _pick_seq_tile(S, B, lambda c: est(c) <= int(0.55 * vmem_cap))
    grid = (B, pl.cdiv(S, ts))

    # TODO(synk): if weights alone exceed the VMEM budget (huge d_embed/d_hidden),
    # a d_embed/Hp reduction grid axis with a pl.when-guarded accumulator is needed.
    vmem_limit = int(min(int(0.75 * vmem_cap), max(2 * est(ts), 32 << 20)))

    wkw = {"pipeline_mode": pl.Buffered(1)} if use_pipeline_mode else {}
    xkw = ({"pipeline_mode": pl.Buffered(x_bufs)}
           if (use_pipeline_mode and x_bufs != 2) else {})

    const_idx = lambda b, s: (0, 0)
    in_specs = [
        # x tile: squeeze batch dim, keep (d_embed, TS) lane-major slab.
        pl.BlockSpec((None, d_embed, ts), lambda b, s: (b, 0, s), **xkw),
        # weights/biases: constant block index -> VMEM-resident, single-buffered.
        pl.BlockSpec((hp, d_embed), const_idx, **wkw),
        pl.BlockSpec((hp, 1), const_idx, **wkw),
        pl.BlockSpec((d_output, hp), const_idx, **wkw),
        pl.BlockSpec((d_output, 1), const_idx, **wkw),
    ]

    cost = pl.CostEstimate(
        flops=2 * B * S * hp * (d_embed + d_output),
        transcendentals=0,
        bytes_accessed=(B * d_embed * S * x_itemsize
                        + B * d_output * S * x_itemsize
                        + (hp * d_embed + d_output * hp) * w_itemsize))

    return pl.pallas_call(
        _ffn_kernel,
        out_shape=jax.ShapeDtypeStruct((B, d_output, S), x.dtype),
        grid=grid,
        in_specs=in_specs,
        out_specs=pl.BlockSpec((None, d_output, ts), lambda b, s: (b, 0, s)),
        compiler_params=pltpu.CompilerParams(
            dimension_semantics=("parallel", "parallel"),   # megacore-shardable
            vmem_limit_bytes=vmem_limit),
        cost_estimate=cost,
    )(x, w1t, b1c, w2t, b2c)


_PIPELINE_MODE_OK = hasattr(pl, "Buffered")


def feed_forward_layer(x, params):
    """x: (B, d_embed, S) -> (B, d_output, S). Matches the PyTorch eval forward."""
    global _PIPELINE_MODE_OK
    w1t, b1c, w2t, b2c = params
    if _PIPELINE_MODE_OK:
        try:
            return _forward(x, w1t, b1c, w2t, b2c, use_pipeline_mode=True)
        except Exception:
            _PIPELINE_MODE_OK = False   # fall back to default double buffering
    return _forward(x, w1t, b1c, w2t, b2c, use_pipeline_mode=False)


# ------------------------- one-time parameter prep ----------------------------

def prepare_params(w1, b1, w2, b2, compute_dtype=None):
    """ONE-TIME prep (outside the per-call path): pad hidden dim + pre-transpose.

    Inputs use the (in, out) layout:
      w1: (d_embed, d_hidden), b1: (d_hidden,), w2: (d_hidden, d_output), b2: (d_output,)
    Returns (w1t, b1c, w2t, b2c):
      w1t: (Hp, d_embed), b1c: (Hp, 1) f32, w2t: (d_output, Hp), b2c: (d_output, 1) f32
    Zero padding is numerically exact (relu(0+0)=0; zero W2t columns add nothing).
    compute_dtype (e.g. jnp.bfloat16) optionally casts the weights for MXU-rate
    matmuls with f32 accumulation — a tolerance decision, off by default.
    """
    d_embed, d_hidden = w1.shape
    d_output = w2.shape[1]
    align = 128 if d_hidden <= 128 else 256     # 256-multiples fill v6e/v7x 256x256 MXUs
    hp = ((d_hidden + align - 1) // align) * align
    pad = hp - d_hidden
    if pad:
        w1 = jnp.pad(w1, ((0, 0), (0, pad)))
        b1 = jnp.pad(b1, ((0, pad),))
        w2 = jnp.pad(w2, ((0, pad), (0, 0)))
    w1t = jnp.transpose(w1)                     # (Hp, d_embed)
    w2t = jnp.transpose(w2)                     # (d_output, Hp)
    if compute_dtype is not None:
        w1t = w1t.astype(compute_dtype)
        w2t = w2t.astype(compute_dtype)
    b1c = b1.astype(jnp.float32).reshape(hp, 1)
    b2c = b2.astype(jnp.float32).reshape(d_output, 1)
    return w1t, b1c, w2t, b2c


def init_params(key, d_embed, d_hidden, d_output, dtype=jnp.float32):
    """PyTorch nn.Linear-style init (uniform +/- 1/sqrt(fan_in)), (in, out) layout."""
    k1, k2, k3, k4 = jax.random.split(key, 4)
    lim1 = 1.0 / (d_embed ** 0.5)
    lim2 = 1.0 / (d_hidden ** 0.5)
    w1 = jax.random.uniform(k1, (d_embed, d_hidden), dtype, -lim1, lim1)
    b1 = jax.random.uniform(k2, (d_hidden,), dtype, -lim1, lim1)
    w2 = jax.random.uniform(k3, (d_hidden, d_output), dtype, -lim2, lim2)
    b2 = jax.random.uniform(k4, (d_output,), dtype, -lim2, lim2)
    return w1, b1, w2, b2


if __name__ == "__main__":
    # Small shapes consistent with the module: x is (batch, d_embed, seq).
    B, d_embed, S = 2, 32, 8
    d_hidden = 50          # module default
    d_output = d_embed     # module default (d_output=None -> d_embed)

    key = jax.random.PRNGKey(0)
    kx, kp = jax.random.split(key)
    x = jax.random.normal(kx, (B, d_embed, S), jnp.float32)
    w1, b1, w2, b2 = init_params(kp, d_embed, d_hidden, d_output)

    params = prepare_params(w1, b1, w2, b2)      # one-time pad + pre-transpose
    out = feed_forward_layer(x, params)
    out = jax.block_until_ready(out)

    # Cross-check against a plain-JAX reference of the PyTorch forward (eval mode).
    xt = jnp.transpose(x, (0, 2, 1))
    ref = jnp.maximum(xt @ w1 + b1, 0.0) @ w2 + b2
    ref = jnp.transpose(ref, (0, 2, 1))
    assert out.shape == (B, d_output, S)
    assert jnp.allclose(out, ref, atol=1e-5, rtol=1e-5)

    print("KERNEL_OK")
</pallas_src>

<mosaic_0001>
module attributes {stable_mosaic.version = 11 : i64} {
  func.func @_ffn_kernel(%arg0: i32, %arg1: i32, %arg2: memref<1x32x8xf32, #tpu.memory_space<vmem>>, %arg3: memref<128x32xf32, #tpu.memory_space<vmem>>, %arg4: memref<128x1xf32, #tpu.memory_space<vmem>>, %arg5: memref<32x128xf32, #tpu.memory_space<vmem>>, %arg6: memref<32x1xf32, #tpu.memory_space<vmem>>, %arg7: memref<1x32x8xf32, #tpu.memory_space<vmem>>) attributes {dimension_semantics = [#tpu.dimension_semantics<parallel>, #tpu.dimension_semantics<parallel>], iteration_bounds = array<i64: 2, 1>, scalar_prefetch = 0 : i64, scratch_operands = 0 : i64, tpu.core_type = #tpu.core_type<tc>, window_params = [{transform_indices = @transform_0, window_bounds = array<i64: 1, 32, 8>}, {pipeline_mode = #tpu.pipeline_mode<synchronous>, transform_indices = @transform_1, window_bounds = array<i64: 128, 32>}, {pipeline_mode = #tpu.pipeline_mode<synchronous>, transform_indices = @transform_2, window_bounds = array<i64: 128, 1>}, {pipeline_mode = #tpu.pipeline_mode<synchronous>, transform_indices = @transform_3, window_bounds = array<i64: 32, 128>}, {pipeline_mode = #tpu.pipeline_mode<synchronous>, transform_indices = @transform_4, window_bounds = array<i64: 32, 1>}, {transform_indices = @transform_5, window_bounds = array<i64: 1, 32, 8>}]} {
    %c0 = arith.constant 0 : index
    %c0_0 = arith.constant 0 : index
    %c0_1 = arith.constant 0 : index
    %0 = vector.load %arg2[%c0, %c0_0, %c0_1] : memref<1x32x8xf32, #tpu.memory_space<vmem>>, vector<1x32x8xf32>
    %1 = vector.shape_cast %0 : vector<1x32x8xf32> to vector<32x8xf32>
    %c0_2 = arith.constant 0 : index
    %c0_3 = arith.constant 0 : index
    %2 = vector.load %arg6[%c0_2, %c0_3] : memref<32x1xf32, #tpu.memory_space<vmem>>, vector<32x1xf32>
    %3 = vector.shape_cast %2 : vector<32x1xf32> to vector<32x1xf32>
    %4 = vector.broadcast %3 : vector<32x1xf32> to vector<32x8xf32>
    %c0_4 = arith.constant 0 : index
    %c0_5 = arith.constant 0 : index
    %5 = vector.load %arg3[%c0_4, %c0_5] : memref<128x32xf32, #tpu.memory_space<vmem>>, vector<128x32xf32>
    %cst = arith.constant dense<0.000000e+00> : vector<128x8xf32>
    %6 = tpu.matmul %5, %1, %cst {dimension_numbers = #tpu.dot_dimension_numbers<[1], [0], [0], [1], [0, 0, 1, 1], [], []>} : vector<128x32xf32>, vector<32x8xf32>, vector<128x8xf32> -> vector<128x8xf32>
    %c0_6 = arith.constant 0 : index
    %c0_7 = arith.constant 0 : index
    %7 = vector.load %arg4[%c0_6, %c0_7] : memref<128x1xf32, #tpu.memory_space<vmem>>, vector<128x1xf32>
    %8 = vector.broadcast %7 : vector<128x1xf32> to vector<128x8xf32>
    %9 = arith.addf %6, %8 : vector<128x8xf32>
    %cst_8 = arith.constant 0.000000e+00 : f32
    %10 = vector.broadcast %cst_8 : f32 to vector<128x8xf32>
    %11 = arith.maximumf %9, %10 : vector<128x8xf32>
    %c0_9 = arith.constant 0 : index
    %c0_10 = arith.constant 0 : index
    %12 = vector.load %arg5[%c0_9, %c0_10] : memref<32x128xf32, #tpu.memory_space<vmem>>, vector<32x128xf32>
    %cst_11 = arith.constant dense<0.000000e+00> : vector<32x8xf32>
    %13 = tpu.matmul %12, %11, %cst_11 {dimension_numbers = #tpu.dot_dimension_numbers<[1], [0], [0], [1], [0, 0, 1, 1], [], []>} : vector<32x128xf32>, vector<128x8xf32>, vector<32x8xf32> -> vector<32x8xf32>
    %14 = arith.addf %4, %13 : vector<32x8xf32>
    %c0_12 = arith.constant 0 : index
    %c0_13 = arith.constant 0 : index
    %c0_14 = arith.constant 0 : index
    %15 = vector.load %arg7[%c0_12, %c0_13, %c0_14] : memref<1x32x8xf32, #tpu.memory_space<vmem>>, vector<1x32x8xf32>
    %16 = vector.shape_cast %15 : vector<1x32x8xf32> to vector<32x8xf32>
    %17 = vector.shape_cast %14 : vector<32x8xf32> to vector<1x32x8xf32>
    tpu.vector_store %arg7[%c0_12, %c0_13, %c0_14], %17 {strides = array<i32>} : memref<1x32x8xf32, #tpu.memory_space<vmem>>, vector<1x32x8xf32>,
    return
  }
  func.func @transform_0(%arg0: i32, %arg1: i32) -> (i32, i32, i32) {
    %c0_i32 = arith.constant 0 : i32
    %c0_i32_0 = arith.constant 0 : i32
    return %arg0, %c0_i32, %arg1 : i32, i32, i32
  }
  func.func @transform_1(%arg0: i32, %arg1: i32) -> (i32, i32) {
    %c0_i32 = arith.constant 0 : i32
    %c0_i32_0 = arith.constant 0 : i32
    %c0_i32_1 = arith.constant 0 : i32
    return %c0_i32, %c0_i32_0 : i32, i32
  }
  func.func @transform_2(%arg0: i32, %arg1: i32) -> (i32, i32) {
    %c0_i32 = arith.constant 0 : i32
    %c0_i32_0 = arith.constant 0 : i32
    %c0_i32_1 = arith.constant 0 : i32
    return %c0_i32, %c0_i32_0 : i32, i32
  }
  func.func @transform_3(%arg0: i32, %arg1: i32) -> (i32, i32) {
    %c0_i32 = arith.constant 0 : i32
    %c0_i32_0 = arith.constant 0 : i32
    %c0_i32_1 = arith.constant 0 : i32
    return %c0_i32, %c0_i32_0 : i32, i32
  }
  func.func @transform_4(%arg0: i32, %arg1: i32) -> (i32, i32) {
    %c0_i32 = arith.constant 0 : i32
    %c0_i32_0 = arith.constant 0 : i32
    %c0_i32_1 = arith.constant 0 : i32
    return %c0_i32, %c0_i32_0 : i32, i32
  }
  func.func @transform_5(%arg0: i32, %arg1: i32) -> (i32, i32, i32) {
    %c0_i32 = arith.constant 0 : i32
    %c0_i32_0 = arith.constant 0 : i32
    return %arg0, %c0_i32, %arg1 : i32, i32, i32
  }
}

</mosaic_0001>

<llo_original>
// kernel: _forward.1
$region0: #{_forward.1}
  #allocation0 [shape = 'u32[]', space=smem, size = 0x4, offset = 0x4, fixed_abs, tag = 'smem constant byte address 0x4 - core index']
  #allocation1 [shape = 'u32[144,128]{1,0:T(1,128)}', space=vmem, size = 0x12000, scoped, tag = 'internal scratch']
  %s0 = inlined_call_operand.vmem [shape: f32[2,32,8], index: 0, kind: input, shape index: {}]
  %s1 = inlined_call_operand.vmem [shape: f32[128,32], index: 1, kind: input, shape index: {}]
  %s2 = inlined_call_operand.vmem [shape: f32[128,1], index: 2, kind: input, shape index: {}]
  %s3 = inlined_call_operand.vmem [shape: f32[32,128], index: 3, kind: input, shape index: {}]
  %s4 = inlined_call_operand.vmem [shape: f32[32,1], index: 4, kind: input, shape index: {}]
  %s5 = inlined_call_operand.vmem [shape: f32[2,32,8], index: 5, kind: output, shape index: {}]
  %s6 = sld [smem:[#allocation0]]
  $region53: #{_forward.1} parent=0
    _
  %s8 = ssub.s32 1, %s6
  %s9 = scalar_select 0, %s8, %s6
  loop: start=0, step=1, limit=4
  $region2: #{_forward.1} parent=0 // loop_pre_header
    _
  $region3: #{_forward.1} parent=0 // loop_header
    %s11 = sphi 0, %s15
    %p12 = scmp.ge.s32.totalorder %s11, 4
    %s18 = sphi 0, %s30
    %s19 = sphi 0, %s26
    %s20 = sphi 0, %s18
    %s21 = sphi 0, %s19
    %s22 = sphi 0, %s20
    %s23 = sphi 0, %s21
    %s35 = sphi 0, %s37
    %s38 = sphi 0, %s35
    %s39 = sphi 0, %s38
    %s55 = sphi 0, %s39
    %s59 = sphi 0, %s59
    %s61 = sphi 0, %s59
    %s62 = sphi 0, %s61
    %s76 = sphi 0, %s62
    %s80 = sphi 0, %s80
    %s82 = sphi 0, %s80
    %s83 = sphi 0, %s82
    %s97 = sphi 0, %s83
    %s101 = sphi 0, %s101
    %s103 = sphi 0, %s101
    %s104 = sphi 0, %s103
    %s118 = sphi 0, %s104
    %s122 = sphi 0, %s122
    %s124 = sphi 0, %s122
    %s125 = sphi 0, %s124
    %s139 = sphi 0, %s125
    %s147 = sphi 0, %s149
    %s150 = sphi 0, %s147
    %s151 = sphi 0, %s150
    %s167 = sphi 0, %s151
  $region4: #{_forward.1} parent=0 // loop_header_branch
    %14 = sbr.rel (%p12) target = $region8
  $region5: #{_forward.1} parent=0 // loop_body
    %s16 = ssub.s32 %s11, 1
    %s17 = ssub.s32 %s11, 2
    %s24 = sadd.s32 1, %s19
    %p25 = scmp.ge.s32.totalorder %s24, 1
    %s26 = scalar_select %p25, 0, %s24
    %s27 = sadd.s32 1, %s18
    %s28 = scalar_select %p25, %s27, %s18
    %p29 = scmp.ge.s32.totalorder %s28, 2
    %s30 = scalar_select %p29, 0, %s28
    %s31 = ssub.s32 %s18, %s30
    %s32 = ssub.s32 %s19, %s26
    %s33 = sor.u32 %s31, %s32
    %p34 = scmp.eq.s32.totalorder %s33, 0
    %s36 = sadd.s32 %s35, 1
    %s37 = scalar_select %p34, %s35, %s36
    %p40 = pneg %p34
    %p41 = scmp.eq.s32.totalorder %s11, 1
    %p42 = por %p40, %p41
    %p43 = scmp.ne.s32.totalorder %s35, %s38
    %p44 = scmp.eq.s32.totalorder %s11, 0
    %p45 = por %p43, %p44
    %p46 = scmp.ne.s32.totalorder %s35, %s38
    %p47 = scmp.eq.s32.totalorder %s16, 1
    %p48 = por %p46, %p47
    %p49 = scmp.ne.s32.totalorder %s38, %s39
    %p50 = scmp.eq.s32.totalorder %s16, 0
    %p51 = por %p49, %p50
    %p52 = scmp.ne.s32.totalorder %s38, %s39
    %p53 = scmp.eq.s32.totalorder %s17, 1
    %p54 = por %p52, %p53
    %p56 = scmp.ne.s32.totalorder %s39, %s55
    %p57 = scmp.eq.s32.totalorder %s17, 0
    %p58 = por %p56, %p57
    %s60 = sadd.s32 %s59, 1
    %p63 = scmp.eq.s32.totalorder %s11, 1
    %p64 = scmp.ne.s32.totalorder %s59, %s61
    %p65 = scmp.eq.s32.totalorder %s11, 0
    %p66 = por %p64, %p65
    %p67 = scmp.ne.s32.totalorder %s59, %s61
    %p68 = scmp.eq.s32.totalorder %s16, 1
    %p69 = por %p67, %p68
    %p70 = scmp.ne.s32.totalorder %s61, %s62
    %p71 = scmp.eq.s32.totalorder %s16, 0
    %p72 = por %p70, %p71
    %p73 = scmp.ne.s32.totalorder %s61, %s62
    %p74 = scmp.eq.s32.totalorder %s17, 1
    %p75 = por %p73, %p74
    %p77 = scmp.ne.s32.totalorder %s62, %s76
    %p78 = scmp.eq.s32.totalorder %s17, 0
    %p79 = por %p77, %p78
    %s81 = sadd.s32 %s80, 1
    %p84 = scmp.eq.s32.totalorder %s11, 1
    %p85 = scmp.ne.s32.totalorder %s80, %s82
    %p86 = scmp.eq.s32.totalorder %s11, 0
    %p87 = por %p85, %p86
    %p88 = scmp.ne.s32.totalorder %s80, %s82
    %p89 = scmp.eq.s32.totalorder %s16, 1
    %p90 = por %p88, %p89
    %p91 = scmp.ne.s32.totalorder %s82, %s83
    %p92 = scmp.eq.s32.totalorder %s16, 0
    %p93 = por %p91, %p92
    %p94 = scmp.ne.s32.totalorder %s82, %s83
    %p95 = scmp.eq.s32.totalorder %s17, 1
    %p96 = por %p94, %p95
    %p98 = scmp.ne.s32.totalorder %s83, %s97
    %p99 = scmp.eq.s32.totalorder %s17, 0
    %p100 = por %p98, %p99
    %s102 = sadd.s32 %s101, 1
    %p105 = scmp.eq.s32.totalorder %s11, 1
    %p106 = scmp.ne.s32.totalorder %s101, %s103
    %p107 = scmp.eq.s32.totalorder %s11, 0
    %p108 = por %p106, %p107
    %p109 = scmp.ne.s32.totalorder %s101, %s103
    %p110 = scmp.eq.s32.totalorder %s16, 1
    %p111 = por %p109, %p110
    %p112 = scmp.ne.s32.totalorder %s103, %s104
    %p113 = scmp.eq.s32.totalorder %s16, 0
    %p114 = por %p112, %p113
    %p115 = scmp.ne.s32.totalorder %s103, %s104
    %p116 = scmp.eq.s32.totalorder %s17, 1
    %p117 = por %p115, %p116
    %p119 = scmp.ne.s32.totalorder %s104, %s118
    %p120 = scmp.eq.s32.totalorder %s17, 0
    %p121 = por %p119, %p120
    %s123 = sadd.s32 %s122, 1
    %p126 = scmp.eq.s32.totalorder %s11, 1
    %p127 = scmp.ne.s32.totalorder %s122, %s124
    %p128 = scmp.eq.s32.totalorder %s11, 0
    %p129 = por %p127, %p128
    %p130 = scmp.ne.s32.totalorder %s122, %s124
    %p131 = scmp.eq.s32.totalorder %s16, 1
    %p132 = por %p130, %p131
    %p133 = scmp.ne.s32.totalorder %s124, %s125
    %p134 = scmp.eq.s32.totalorder %s16, 0
    %p135 = por %p133, %p134
    %p136 = scmp.ne.s32.totalorder %s124, %s125
    %p137 = scmp.eq.s32.totalorder %s17, 1
    %p138 = por %p136, %p137
    %p140 = scmp.ne.s32.totalorder %s125, %s139
    %p141 = scmp.eq.s32.totalorder %s17, 0
    %p142 = por %p140, %p141
    %s143 = ssub.s32 %s18, %s30
    %s144 = ssub.s32 %s19, %s26
    %s145 = sor.u32 %s143, %s144
    %p146 = scmp.eq.s32.totalorder %s145, 0
    %s148 = sadd.s32 %s147, 1
    %s149 = scalar_select %p146, %s147, %s148
    %p152 = pneg %p146
    %p153 = scmp.eq.s32.totalorder %s11, 1
    %p154 = por %p152, %p153
    %p155 = scmp.ne.s32.totalorder %s147, %s150
    %p156 = scmp.eq.s32.totalorder %s11, 0
    %p157 = por %p155, %p156
    %p158 = scmp.ne.s32.totalorder %s147, %s150
    %p159 = scmp.eq.s32.totalorder %s16, 1
    %p160 = por %p158, %p159
    %p161 = scmp.ne.s32.totalorder %s150, %s151
    %p162 = scmp.eq.s32.totalorder %s16, 0
    %p163 = por %p161, %p162
    %p164 = scmp.ne.s32.totalorder %s150, %s151
    %p165 = scmp.eq.s32.totalorder %s17, 1
    %p166 = por %p164, %p165
    %p168 = scmp.ne.s32.totalorder %s151, %s167
    %p169 = scmp.eq.s32.totalorder %s17, 0
    %p170 = por %p168, %p169
    %p171 = scmp.le.s32.totalorder 1, %s11
    %p172 = scmp.lt.s32.totalorder %s11, 3
    %p173 = pnand %p171, %p172
    %p174 = pneg %p173
    // Predicated region
    $region9: #{_forward.1} parent=5 // pred_check
      _
    $region10: #{_forward.1} parent=5 // pred_check_branch
      %176 = sbr.rel (%p173) target = $region12
    $region11: #{_forward.1} parent=5 // pred_region
      %s177 = ssub.s32 %s11, 1
      // Predicated region
      $region13: #{_forward.1} parent=11 // pred_check
        %p178 = pneg %p72
      $region14: #{_forward.1} parent=11 // pred_check_branch
        %180 = sbr.rel (%p178) target = $region16
      $region15: #{_forward.1} parent=11 // pred_region
        _
      $region16: #{_forward.1} parent=11 // pred_fallthru
        _
      // Predicated region
      $region17: #{_forward.1} parent=11 // pred_check
        %p181 = pneg %p93
      $region18: #{_forward.1} parent=11 // pred_check_branch
        %183 = sbr.rel (%p181) target = $region20
      $region19: #{_forward.1} parent=11 // pred_region
        _
      $region20: #{_forward.1} parent=11 // pred_fallthru
        _
      // Predicated region
      $region21: #{_forward.1} parent=11 // pred_check
        %p184 = pneg %p114
      $region22: #{_forward.1} parent=11 // pred_check_branch
        %186 = sbr.rel (%p184) target = $region24
      $region23: #{_forward.1} parent=11 // pred_region
        _
      $region24: #{_forward.1} parent=11 // pred_fallthru
        _
      // Predicated region
      $region25: #{_forward.1} parent=11 // pred_check
        %p187 = pneg %p135
      $region26: #{_forward.1} parent=11 // pred_check_branch
        %189 = sbr.rel (%p187) target = $region28
      $region27: #{_forward.1} parent=11 // pred_region
        _
      $region28: #{_forward.1} parent=11 // pred_fallthru
        _
    $region12: #{_forward.1} parent=5 // pred_fallthru
      _
    %p190 = scmp.lt.s32.totalorder %s11, 2
    // Predicated region
    $region29: #{_forward.1} parent=5 // pred_check
      %p191 = pneg %p190
    $region30: #{_forward.1} parent=5 // pred_check_branch
      %193 = sbr.rel (%p191) target = $region32
    $region31: #{_forward.1} parent=5 // pred_region
      // Predicated region
      $region33: #{_forward.1} parent=31 // pred_check
        %p194 = pneg %p45
      $region34: #{_forward.1} parent=31 // pred_check_branch
        %196 = sbr.rel (%p194) target = $region36
      $region35: #{_forward.1} parent=31 // pred_region
        %p197 = scmp.lt.s32.totalorder %s18, 1
        %s198 = scalar_select %p197, %s18, 1
        %p199 = scmp.lt.s32.totalorder %s19, 0
        %s200 = scalar_select %p199, %s19, 0
        %s201 = smul.addr %s198, 4
        %s202 = sadd.s32 %s200, %s201
        %s203 = smul.addr %s202, 8
        %s204 = scalar_lea.vmem %s0, %s203
      $region36: #{_forward.1} parent=31 // pred_fallthru
        _
    $region32: #{_forward.1} parent=5 // pred_fallthru
      _
    %p205 = scmp.le.s32.totalorder 1, %s11
    %p206 = scmp.lt.s32.totalorder %s11, 3
    %p207 = pnand %p205, %p206
    %p208 = pneg %p207
    // Predicated region
    $region37: #{_forward.1} parent=5 // pred_check
      _
    $region38: #{_forward.1} parent=5 // pred_check_branch
      %210 = sbr.rel (%p207) target = $region40
    $region39: #{_forward.1} parent=5 // pred_region
      %s211 = ssub.s32 %s11, 1
      %p212 = scmp.lt.s32.totalorder %s20, 1
      %s213 = scalar_select %p212, %s20, 1
      %p214 = scmp.lt.s32.totalorder %s21, 0
      %s215 = scalar_select %p214, %s21, 0
      %s216 = smul.addr %s213, 4
      %s217 = sadd.s32 %s215, %s216
      %s218 = smul.addr %s217, 8
      %s219 = scalar_lea.vmem %s0, %s218
      %p220 = pneg %p51
      %p221 = pneg %p48
      %p222 = pneg %p72
      %p223 = pneg %p69
      %p224 = pneg %p93
      %p225 = pneg %p90
      %p226 = pneg %p114
      %p227 = pneg %p111
      %p228 = pneg %p135
      %p229 = pneg %p132
      %p230 = pneg %p163
      %p231 = pneg %p160
      %p232 = scmp.lt.s32.totalorder %s20, 1
      %s233 = scalar_select %p232, %s20, 1
      %p234 = scmp.lt.s32.totalorder %s21, 0
      %s235 = scalar_select %p234, %s21, 0
      %s236 = smul.addr %s233, 4
      %s237 = sadd.s32 %s235, %s236
      %s238 = smul.addr %s237, 8
      %s239 = scalar_lea.vmem %s5, %s238
      %p240 = scmp.lt.s32.totalorder %s20, 1
      %s241 = scalar_select %p240, %s20, 1
      %p242 = scmp.lt.s32.totalorder %s21, 0
      %s243 = scalar_select %p242, %s21, 0
      %s244 = smul.addr %s241, 4
      %s245 = sadd.s32 %s243, %s244
      %s246 = smul.addr %s245, 8
      %s247 = scalar_lea.vmem %s0, %s246
      %p248 = scmp.lt.s32.totalorder %s20, 1
      %s249 = scalar_select %p248, %s20, 1
      %p250 = scmp.lt.s32.totalorder %s21, 0
      %s251 = scalar_select %p250, %s21, 0
      %s252 = smul.addr %s249, 4
      %s253 = sadd.s32 %s251, %s252
      %s254 = smul.addr %s253, 8
      %s255 = scalar_lea.vmem %s5, %s254
      %v256 = vld [vmem:[%s247] sm:$0xff]
      %v257 = vld [vmem:[%s247 + $0x8] sm:$0xff]
      %v258 = vld [vmem:[%s247 + $0x10] sm:$0xff]
      %v259 = vld [vmem:[%s247 + $0x18] sm:$0xff]
      %v260 = vld [vmem:[%s4] sm:$0xff]
      %v261 = vld [vmem:[%s4 + $0x8] sm:$0xff]
      %v262 = vld [vmem:[%s4 + $0x10] sm:$0xff]
      %v263 = vld [vmem:[%s4 + $0x18] sm:$0xff]
      %265 = vset.pattern.permute.xlu0 0
      %266 = vperm.xlu0 %265, %v260
      %v267 = vpop.permute.xlu0 %266
      %270 = vset.pattern.permute.xlu0 0
      %271 = vperm.xlu0 %270, %v261
      %v272 = vpop.permute.xlu0 %271
      %275 = vset.pattern.permute.xlu0 0
      %276 = vperm.xlu0 %275, %v262
      %v277 = vpop.permute.xlu0 %276
      %280 = vset.pattern.permute.xlu0 0
      %281 = vperm.xlu0 %280, %v263
      %v282 = vpop.permute.xlu0 %281
      %v284 = vld [vmem:[%s1] sm:$0xff]
      %v285 = vld [vmem:[%s1 + $0x8] sm:$0xff]
      %v286 = vld [vmem:[%s1 + $0x10] sm:$0xff]
      %v287 = vld [vmem:[%s1 + $0x18] sm:$0xff]
      %v288 = vld [vmem:[%s1 + $0x20] sm:$0xff]
      %v289 = vld [vmem:[%s1 + $0x28] sm:$0xff]
      %v290 = vld [vmem:[%s1 + $0x30] sm:$0xff]
      %v291 = vld [vmem:[%s1 + $0x38] sm:$0xff]
      %v292 = vld [vmem:[%s1 + $0x40] sm:$0xff]
      %v293 = vld [vmem:[%s1 + $0x48] sm:$0xff]
      %v294 = vld [vmem:[%s1 + $0x50] sm:$0xff]
      %v295 = vld [vmem:[%s1 + $0x58] sm:$0xff]
      %v296 = vld [vmem:[%s1 + $0x60] sm:$0xff]
      %v297 = vld [vmem:[%s1 + $0x68] sm:$0xff]
      %v298 = vld [vmem:[%s1 + $0x70] sm:$0xff]
      %v299 = vld [vmem:[%s1 + $0x78] sm:$0xff]
      %v300 = vld [vmem:[%s2] sm:$0xff]
      %v301 = vld [vmem:[%s2 + $0x8] sm:$0xff]
      %v302 = vld [vmem:[%s2 + $0x10] sm:$0xff]
      %v303 = vld [vmem:[%s2 + $0x18] sm:$0xff]
      %v304 = vld [vmem:[%s2 + $0x20] sm:$0xff]
      %v305 = vld [vmem:[%s2 + $0x28] sm:$0xff]
      %v306 = vld [vmem:[%s2 + $0x30] sm:$0xff]
      %v307 = vld [vmem:[%s2 + $0x38] sm:$0xff]
      %v308 = vld [vmem:[%s2 + $0x40] sm:$0xff]
      %v309 = vld [vmem:[%s2 + $0x48] sm:$0xff]
      %v310 = vld [vmem:[%s2 + $0x50] sm:$0xff]
      %v311 = vld [vmem:[%s2 + $0x58] sm:$0xff]
      %v312 = vld [vmem:[%s2 + $0x60] sm:$0xff]
      %v313 = vld [vmem:[%s2 + $0x68] sm:$0xff]
      %v314 = vld [vmem:[%s2 + $0x70] sm:$0xff]
      %v315 = vld [vmem:[%s2 + $0x78] sm:$0xff]
      %317 = vset.pattern.permute.xlu0 0
      %318 = vperm.xlu0 %317, %v300
      %v319 = vpop.permute.xlu0 %318
      %322 = vset.pattern.permute.xlu0 0
      %323 = vperm.xlu0 %322, %v301
      %v324 = vpop.permute.xlu0 %323
      %327 = vset.pattern.permute.xlu0 0
      %328 = vperm.xlu0 %327, %v302
      %v329 = vpop.permute.xlu0 %328
      %332 = vset.pattern.permute.xlu0 0
      %333 = vperm.xlu0 %332, %v303
      %v334 = vpop.permute.xlu0 %333
      %337 = vset.pattern.permute.xlu0 0
      %338 = vperm.xlu0 %337, %v304
      %v339 = vpop.permute.xlu0 %338
      %342 = vset.pattern.permute.xlu0 0
      %343 = vperm.xlu0 %342, %v305
      %v344 = vpop.permute.xlu0 %343
      %347 = vset.pattern.permute.xlu0 0
      %348 = vperm.xlu0 %347, %v306
      %v349 = vpop.permute.xlu0 %348
      %352 = vset.pattern.permute.xlu0 0
      %353 = vperm.xlu0 %352, %v307
      %v354 = vpop.permute.xlu0 %353
      %357 = vset.pattern.permute.xlu0 0
      %358 = vperm.xlu0 %357, %v308
      %v359 = vpop.permute.xlu0 %358
      %362 = vset.pattern.permute.xlu0 0
      %363 = vperm.xlu0 %362, %v309
      %v364 = vpop.permute.xlu0 %363
      %367 = vset.pattern.permute.xlu0 0
      %368 = vperm.xlu0 %367, %v310
      %v369 = vpop.permute.xlu0 %368
      %372 = vset.pattern.permute.xlu0 0
      %373 = vperm.xlu0 %372, %v311
      %v374 = vpop.permute.xlu0 %373
      %377 = vset.pattern.permute.xlu0 0
      %378 = vperm.xlu0 %377, %v312
      %v379 = vpop.permute.xlu0 %378
      %382 = vset.pattern.permute.xlu0 0
      %383 = vperm.xlu0 %382, %v313
      %v384 = vpop.permute.xlu0 %383
      %387 = vset.pattern.permute.xlu0 0
      %388 = vperm.xlu0 %387, %v314
      %v389 = vpop.permute.xlu0 %388
      %392 = vset.pattern.permute.xlu0 0
      %393 = vperm.xlu0 %392, %v315
      %v394 = vpop.permute.xlu0 %393
      %vm396 = vcmask 261120
      %v398 = vsel %vm396, %v284, 0
      %v401 = vsel %vm396, %v285, 0
      %v404 = vsel %vm396, %v286, 0
      %v407 = vsel %vm396, %v287, 0
      %v410 = vsel %vm396, %v288, 0
      %v413 = vsel %vm396, %v289, 0
      %v416 = vsel %vm396, %v290, 0
      %v419 = vsel %vm396, %v291, 0
      %v422 = vsel %vm396, %v292, 0
      %v425 = vsel %vm396, %v293, 0
      %v428 = vsel %vm396, %v294, 0
      %v431 = vsel %vm396, %v295, 0
      %v434 = vsel %vm396, %v296, 0
      %v437 = vsel %vm396, %v297, 0
      %v440 = vsel %vm396, %v298, 0
      %v443 = vsel %vm396, %v299, 0
      %445 = vmatprep.subr.mxu0 0.0
      %446 = vmatpush1.msra.mxu0 0.0
      %447 = vmatprep.subr.mxu0 0.0
      %448 = vmatpush1.msra.mxu0 0.0
      %449 = vmatprep.subr.mxu0 0.0
      %450 = vmatpush1.msra.mxu0 0.0
      %451 = vmatprep.subr.mxu0 0.0
      %452 = vmatpush1.msra.mxu0 0.0
      %453 = vmatprep.subr.mxu0 0.0
      %454 = vmatpush1.msra.mxu0 0.0
      %455 = vmatprep.subr.mxu0 0.0
      %456 = vmatpush1.msra.mxu0 0.0
      %457 = vmatprep.subr.mxu0 0.0
      %458 = vmatpush1.msra.mxu0 0.0
      %459 = vmatprep.subr.mxu0 0.0
      %460 = vmatpush1.msra.mxu0 0.0
      %461 = vmatprep.subr.mxu0 0.0
      %462 = vmatpush1.msra.mxu0 0.0
      %463 = vmatprep.subr.mxu0 0.0
      %464 = vmatpush1.msra.mxu0 0.0
      %465 = vmatprep.subr.mxu0 0.0
      %466 = vmatpush1.msra.mxu0 0.0
      %467 = vmatprep.subr.mxu0 0.0
      %468 = vmatpush1.msra.mxu0 0.0
      %469 = vmatprep.subr.mxu0 0.0
      %470 = vmatpush1.msra.mxu0 %v259
      %471 = vmatprep.subr.mxu0 0.0
      %472 = vmatpush1.msra.mxu0 %v258
      %473 = vmatprep.subr.mxu0 0.0
      %474 = vmatpush1.msra.mxu0 %v257
      %475 = vmatprep.subr.mxu0 0.0
      %476 = vmatpush1.msra.mxu0 %v256
      %477 = vmatprep.subr.mxu0 0.0
      %478 = vmatpush2.msra.mxu0 0.0
      %479 = vmatprep.subr.mxu0 0.0
      %480 = vmatpush2.msra.mxu0 0.0
      %481 = vmatprep.subr.mxu0 0.0
      %482 = vmatpush2.msra.mxu0 0.0
      %483 = vmatprep.subr.mxu0 0.0
      %484 = vmatpush2.msra.mxu0 0.0
      %485 = vmatprep.subr.mxu0 0.0
      %486 = vmatpush2.msra.mxu0 0.0
      %487 = vmatprep.subr.mxu0 0.0
      %488 = vmatpush2.msra.mxu0 0.0
      %489 = vmatprep.subr.mxu0 0.0
      %490 = vmatpush2.msra.mxu0 0.0
      %491 = vmatprep.subr.mxu0 0.0
      %492 = vmatpush2.msra.mxu0 0.0
      %493 = vmatprep.subr.mxu0 0.0
      %494 = vmatpush2.msra.mxu0 0.0
      %495 = vmatprep.subr.mxu0 0.0
      %496 = vmatpush2.msra.mxu0 0.0
      %497 = vmatprep.subr.mxu0 0.0
      %498 = vmatpush2.msra.mxu0 0.0
      %499 = vmatprep.subr.mxu0 0.0
      %500 = vmatpush2.msra.mxu0 0.0
      %501 = vmatprep.subr.mxu0 0.0
      %502 = vmatpush2.msra.mxu0 0.0
      %503 = vmatprep.subr.mxu0 0.0
      %504 = vmatpush2.msra.mxu0 0.0
      %505 = vmatprep.subr.mxu0 0.0
      %506 = vmatpush2.msra.mxu0 0.0
      %507 = vmatprep.subr.mxu0 0.0
      %508 = vmatpush2.msra.mxu0 0.0
      %509 = vmatprep.mubr.f32.mxu0 0.0
      %510 = vmatmul.mubr.f32.gmra.mxu0 %v398
      %v511 = vpop.f32.mrf.mxu0
      %v512 = vadd.f32 %v319, %v511
      %v513 = vpop.f32.mrf.mxu0
      %514 = vmatprep.mubr.f32.mxu0 0.0
      %515 = vmatmul.mubr.f32.gmra.mxu0 %v401
      %v516 = vpop.f32.mrf.mxu0
      %v517 = vadd.f32 %v324, %v516
      %v518 = vpop.f32.mrf.mxu0
      %519 = vmatprep.mubr.f32.mxu0 0.0
      %520 = vmatmul.mubr.f32.gmra.mxu0 %v404
      %v521 = vpop.f32.mrf.mxu0
      %v522 = vadd.f32 %v329, %v521
      %v523 = vpop.f32.mrf.mxu0
      %524 = vmatprep.mubr.f32.mxu0 0.0
      %525 = vmatmul.mubr.f32.gmra.mxu0 %v407
      %v526 = vpop.f32.mrf.mxu0
      %v527 = vadd.f32 %v334, %v526
      %v528 = vpop.f32.mrf.mxu0
      %529 = vmatprep.mubr.f32.mxu0 0.0
      %530 = vmatmul.mubr.f32.gmra.mxu0 %v410
      %v531 = vpop.f32.mrf.mxu0
      %v532 = vadd.f32 %v339, %v531
      %v533 = vpop.f32.mrf.mxu0
      %534 = vmatprep.mubr.f32.mxu0 0.0
      %535 = vmatmul.mubr.f32.gmra.mxu0 %v413
      %v536 = vpop.f32.mrf.mxu0
      %v537 = vadd.f32 %v344, %v536
      %v538 = vpop.f32.mrf.mxu0
      %539 = vmatprep.mubr.f32.mxu0 0.0
      %540 = vmatmul.mubr.f32.gmra.mxu0 %v416
      %v541 = vpop.f32.mrf.mxu0
      %v542 = vadd.f32 %v349, %v541
      %v543 = vpop.f32.mrf.mxu0
      %544 = vmatprep.mubr.f32.mxu0 0.0
      %545 = vmatmul.mubr.f32.gmra.mxu0 %v419
      %v546 = vpop.f32.mrf.mxu0
      %v547 = vadd.f32 %v354, %v546
      %v548 = vpop.f32.mrf.mxu0
      %549 = vmatprep.mubr.f32.mxu0 0.0
      %550 = vmatmul.mubr.f32.gmra.mxu0 %v422
      %v551 = vpop.f32.mrf.mxu0
      %v552 = vadd.f32 %v359, %v551
      %v553 = vpop.f32.mrf.mxu0
      %554 = vmatprep.mubr.f32.mxu0 0.0
      %555 = vmatmul.mubr.f32.gmra.mxu0 %v425
      %v556 = vpop.f32.mrf.mxu0
      %v557 = vadd.f32 %v364, %v556
      %v558 = vpop.f32.mrf.mxu0
      %559 = vmatprep.mubr.f32.mxu0 0.0
      %560 = vmatmul.mubr.f32.gmra.mxu0 %v428
      %v561 = vpop.f32.mrf.mxu0
      %v562 = vadd.f32 %v369, %v561
      %v563 = vpop.f32.mrf.mxu0
      %564 = vmatprep.mubr.f32.mxu0 0.0
      %565 = vmatmul.mubr.f32.gmra.mxu0 %v431
      %v566 = vpop.f32.mrf.mxu0
      %v567 = vadd.f32 %v374, %v566
      %v568 = vpop.f32.mrf.mxu0
      %569 = vmatprep.mubr.f32.mxu0 0.0
      %570 = vmatmul.mubr.f32.gmra.mxu0 %v434
      %v571 = vpop.f32.mrf.mxu0
      %v572 = vadd.f32 %v379, %v571
      %v573 = vpop.f32.mrf.mxu0
      %574 = vmatprep.mubr.f32.mxu0 0.0
      %575 = vmatmul.mubr.f32.gmra.mxu0 %v437
      %v576 = vpop.f32.mrf.mxu0
      %v577 = vadd.f32 %v384, %v576
      %v578 = vpop.f32.mrf.mxu0
      %579 = vmatprep.mubr.f32.mxu0 0.0
      %580 = vmatmul.mubr.f32.gmra.mxu0 %v440
      %v581 = vpop.f32.mrf.mxu0
      %v582 = vadd.f32 %v389, %v581
      %v583 = vpop.f32.mrf.mxu0
      %584 = vmatprep.mubr.f32.mxu0 0.0
      %585 = vmatmul.mubr.f32.gmra.mxu0 %v443
      %v586 = vpop.f32.mrf.mxu0
      %v587 = vadd.f32 %v394, %v586
      %v588 = vpop.f32.mrf.mxu0
      %589 = vdwg.mxu0
      %v590 = vmax.f32 %v512, 0.0
      %v591 = vmax.f32 %v517, 0.0
      %v592 = vmax.f32 %v522, 0.0
      %v593 = vmax.f32 %v527, 0.0
      %v594 = vmax.f32 %v532, 0.0
      %v595 = vmax.f32 %v537, 0.0
      %v596 = vmax.f32 %v542, 0.0
      %v597 = vmax.f32 %v547, 0.0
      %v598 = vmax.f32 %v552, 0.0
      %v599 = vmax.f32 %v557, 0.0
      %v600 = vmax.f32 %v562, 0.0
      %v601 = vmax.f32 %v567, 0.0
      %v602 = vmax.f32 %v572, 0.0
      %v603 = vmax.f32 %v577, 0.0
      %v604 = vmax.f32 %v582, 0.0
      %v605 = vmax.f32 %v587, 0.0
      %v606 = vld [vmem:[%s3] sm:$0xff]
      %v607 = vld [vmem:[%s3 + $0x8] sm:$0xff]
      %v608 = vld [vmem:[%s3 + $0x10] sm:$0xff]
      %v609 = vld [vmem:[%s3 + $0x18] sm:$0xff]
      %610 = vmatprep.subr.mxu0 0.0
      %611 = vmatpush1.msra.mxu0 %v605
      %612 = vmatprep.subr.mxu0 0.0
      %613 = vmatpush1.msra.mxu0 %v604
      %614 = vmatprep.subr.mxu0 0.0
      %615 = vmatpush1.msra.mxu0 %v603
      %616 = vmatprep.subr.mxu0 0.0
      %617 = vmatpush1.msra.mxu0 %v602
      %618 = vmatprep.subr.mxu0 0.0
      %619 = vmatpush1.msra.mxu0 %v601
      %620 = vmatprep.subr.mxu0 0.0
      %621 = vmatpush1.msra.mxu0 %v600
      %622 = vmatprep.subr.mxu0 0.0
      %623 = vmatpush1.msra.mxu0 %v599
      %624 = vmatprep.subr.mxu0 0.0
      %625 = vmatpush1.msra.mxu0 %v598
      %626 = vmatprep.subr.mxu0 0.0
      %627 = vmatpush1.msra.mxu0 %v597
      %628 = vmatprep.subr.mxu0 0.0
      %629 = vmatpush1.msra.mxu0 %v596
      %630 = vmatprep.subr.mxu0 0.0
      %631 = vmatpush1.msra.mxu0 %v595
      %632 = vmatprep.subr.mxu0 0.0
      %633 = vmatpush1.msra.mxu0 %v594
      %634 = vmatprep.subr.mxu0 0.0
      %635 = vmatpush1.msra.mxu0 %v593
      %636 = vmatprep.subr.mxu0 0.0
      %637 = vmatpush1.msra.mxu0 %v592
      %638 = vmatprep.subr.mxu0 0.0
      %639 = vmatpush1.msra.mxu0 %v591
      %640 = vmatprep.subr.mxu0 0.0
      %641 = vmatpush1.msra.mxu0 %v590
      %642 = vmatprep.subr.mxu0 0.0
      %643 = vmatpush2.msra.mxu0 0.0
      %644 = vmatprep.subr.mxu0 0.0
      %645 = vmatpush2.msra.mxu0 0.0
      %646 = vmatprep.subr.mxu0 0.0
      %647 = vmatpush2.msra.mxu0 0.0
      %648 = vmatprep.subr.mxu0 0.0
      %649 = vmatpush2.msra.mxu0 0.0
      %650 = vmatprep.subr.mxu0 0.0
      %651 = vmatpush2.msra.mxu0 0.0
      %652 = vmatprep.subr.mxu0 0.0
      %653 = vmatpush2.msra.mxu0 0.0
      %654 = vmatprep.subr.mxu0 0.0
      %655 = vmatpush2.msra.mxu0 0.0
      %656 = vmatprep.subr.mxu0 0.0
      %657 = vmatpush2.msra.mxu0 0.0
      %658 = vmatprep.subr.mxu0 0.0
      %659 = vmatpush2.msra.mxu0 0.0
      %660 = vmatprep.subr.mxu0 0.0
      %661 = vmatpush2.msra.mxu0 0.0
      %662 = vmatprep.subr.mxu0 0.0
      %663 = vmatpush2.msra.mxu0 0.0
      %664 = vmatprep.subr.mxu0 0.0
      %665 = vmatpush2.msra.mxu0 0.0
      %666 = vmatprep.subr.mxu0 0.0
      %667 = vmatpush2.msra.mxu0 0.0
      %668 = vmatprep.subr.mxu0 0.0
      %669 = vmatpush2.msra.mxu0 0.0
      %670 = vmatprep.subr.mxu0 0.0
      %671 = vmatpush2.msra.mxu0 0.0
      %672 = vmatprep.subr.mxu0 0.0
      %673 = vmatpush2.msra.mxu0 0.0
      %674 = vmatprep.mubr.f32.mxu0 0.0
      %675 = vmatmul.mubr.f32.gmra.mxu0 %v606
      %v676 = vpop.f32.mrf.mxu0
      %v677 = vadd.f32 0.0, %v676
      %v678 = vpop.f32.mrf.mxu0
      %679 = vmatprep.mubr.f32.mxu0 0.0
      %680 = vmatmul.mubr.f32.gmra.mxu0 %v607
      %v681 = vpop.f32.mrf.mxu0
      %v682 = vadd.f32 0.0, %v681
      %v683 = vpop.f32.mrf.mxu0
      %684 = vmatprep.mubr.f32.mxu0 0.0
      %685 = vmatmul.mubr.f32.gmra.mxu0 %v608
      %v686 = vpop.f32.mrf.mxu0
      %v687 = vadd.f32 0.0, %v686
      %v688 = vpop.f32.mrf.mxu0
      %689 = vmatprep.mubr.f32.mxu0 0.0
      %690 = vmatmul.mubr.f32.gmra.mxu0 %v609
      %v691 = vpop.f32.mrf.mxu0
      %v692 = vadd.f32 0.0, %v691
      %v693 = vpop.f32.mrf.mxu0
      %694 = vdwg.mxu0
      %v695 = vadd.f32 %v267, %v677
      %v696 = vadd.f32 %v272, %v682
      %v697 = vadd.f32 %v277, %v687
      %v698 = vadd.f32 %v282, %v692
      %vm699 = vcmask 64512
      %700 = vst.msk [vmem:[%s255] sm:$0xff] %vm699, %v695
      %701 = vst.msk [vmem:[%s255 + $0x8] sm:$0xff] %vm699, %v696
      %702 = vst.msk [vmem:[%s255 + $0x10] sm:$0xff] %vm699, %v697
      %703 = vst.msk [vmem:[%s255 + $0x18] sm:$0xff] %vm699, %v698
      %p704 = scmp.lt.s32.totalorder %s20, 1
      %s705 = scalar_select %p704, %s20, 1
      %p706 = scmp.lt.s32.totalorder %s21, 0
      %s707 = scalar_select %p706, %s21, 0
      %s708 = smul.addr %s705, 4
      %s709 = sadd.s32 %s707, %s708
      %s710 = smul.addr %s709, 8
      %s711 = scalar_lea.vmem %s5, %s710
      // Predicated region
      $region41: #{_forward.1} parent=39 // pred_check
        %p712 = pneg %p160
      $region42: #{_forward.1} parent=39 // pred_check_branch
        %714 = sbr.rel (%p712) target = $region44
      $region43: #{_forward.1} parent=39 // pred_region
        _
      $region44: #{_forward.1} parent=39 // pred_fallthru
        _
    $region40: #{_forward.1} parent=5 // pred_fallthru
      _
    %p715 = scmp.le.s32.totalorder 2, %s11
    // Predicated region
    $region45: #{_forward.1} parent=5 // pred_check
      %p716 = pneg %p715
    $region46: #{_forward.1} parent=5 // pred_check_branch
      %718 = sbr.rel (%p716) target = $region48
    $region47: #{_forward.1} parent=5 // pred_region
      %s719 = ssub.s32 %s11, 2
      // Predicated region
      $region49: #{_forward.1} parent=47 // pred_check
        %p720 = pneg %p166
      $region50: #{_forward.1} parent=47 // pred_check_branch
        %722 = sbr.rel (%p720) target = $region52
      $region51: #{_forward.1} parent=47 // pred_region
        %p723 = scmp.lt.s32.totalorder %s22, 1
        %s724 = scalar_select %p723, %s22, 1
        %p725 = scmp.lt.s32.totalorder %s23, 0
        %s726 = scalar_select %p725, %s23, 0
        %s727 = smul.addr %s724, 4
        %s728 = sadd.s32 %s726, %s727
        %s729 = smul.addr %s728, 8
        %s730 = scalar_lea.vmem %s5, %s729
      $region52: #{_forward.1} parent=47 // pred_fallthru
        _
    $region48: #{_forward.1} parent=5 // pred_fallthru
      _
  $region6: #{_forward.1} parent=0 // loop_footer
    %s15 = sadd.s32 1, %s11
  $region7: #{_forward.1} parent=0 // loop_footer_branch
    %10 = sbr.rel target = $region3
  $region8: #{_forward.1} parent=0 // loop_exit
    _

</llo_original>
